<compile_context>
chip_gen: v6e
topology: v6e:2x2x1
jax: 0.10.0
libtpu: 0.0.40
codegen_flags: <defaults>
</compile_context>

<pallas_src>
import jax
import jax.numpy as jnp
from jax.experimental import pallas as pl
from jax.experimental.pallas import tpu as pltpu

SEQ, IN, HID, OUT = 3, 10, 20, 5   # module spec: input=10, hidden=20, output=5, seq=3


def rnn_kernel(x_ref, wxh_ref, whh_ref, b_rnn_ref, wfc_ref, bfc_ref, h0_ref,
               out_ref):
    """Whole forward pass in one kernel invocation (all operands fit in VMEM)."""
    seq = x_ref.shape[0]                     # compile-time constant (3)

    # Loop-invariant loads / bias fold done ONCE, in-kernel.
    whh = whh_ref[...]                                        # (HID, HID)
    b = jnp.sum(b_rnn_ref[...], axis=0, keepdims=True)        # (1, HID) = bxh+bhh+bh

    # Input projection for ALL timesteps in one MXU push: (SEQ,IN) @ (IN,HID).
    xw = jnp.dot(x_ref[...], wxh_ref[...],
                 preferred_element_type=jnp.float32) + b      # (SEQ, HID)

    # Statically unrolled serial recurrence; hidden states stay in registers.
    h = h0_ref[...]                                           # (1, HID)
    hs = []
    for i in range(seq):
        pre = xw[i:i + 1, :] + jnp.dot(h, whh,
                                       preferred_element_type=jnp.float32)
        h = jnp.tanh(pre)
        hs.append(h)
    hidden = jnp.concatenate(hs, axis=0)                      # (SEQ, HID)

    # FC + softmax(dim=1): divide moved to EUP reciprocal (exact) + VPU mul.
    logits = jnp.dot(hidden, wfc_ref[...],
                     preferred_element_type=jnp.float32) + bfc_ref[...]
    m = jnp.max(logits, axis=1, keepdims=True)
    e = jnp.exp(logits - m)
    inv = pl.reciprocal(jnp.sum(e, axis=1, keepdims=True))    # approx=False (1e-5 tol)
    out_ref[...] = e * inv


def simple_rnn(x, wxh, bxh, whh, bhh, bh, wfc, bfc, h0):
    seq = x.shape[0]
    out_size = wfc.shape[1]
    # Stack the three hidden-sized biases into ONE operand (fewer DMA
    # descriptors); the actual fold (sum) happens inside the kernel.
    b_rnn = jnp.concatenate([bxh, bhh, bh], axis=0)           # (3, HID)
    return pl.pallas_call(
        rnn_kernel,
        out_shape=jax.ShapeDtypeStruct((seq, out_size), jnp.float32),
        in_specs=[pl.BlockSpec(memory_space=pltpu.MemorySpace.VMEM)] * 7,
        out_specs=pl.BlockSpec(memory_space=pltpu.MemorySpace.VMEM),
    )(x, wxh, whh, b_rnn, wfc, bfc, h0)


if __name__ == "__main__":
    key = jax.random.PRNGKey(0)
    ks = jax.random.split(key, 7)

    # inputs (input_data = randn(3, 10), hidden_state = zeros(1, 20))
    x = jax.random.normal(ks[0], (SEQ, IN), jnp.float32)
    h0 = jnp.zeros((1, HID), jnp.float32)

    # deterministic parameter init (PyTorch Linear weight is (out, in); stored transposed here)
    wxh = jax.random.normal(ks[1], (IN, HID), jnp.float32) * 0.1
    bxh = jax.random.normal(ks[2], (1, HID), jnp.float32) * 0.1
    whh = jax.random.normal(ks[3], (HID, HID), jnp.float32) * 0.1
    bhh = jax.random.normal(ks[4], (1, HID), jnp.float32) * 0.1
    bh = jnp.zeros((1, HID), jnp.float32)        # nn.Parameter(torch.zeros(hidden_size))
    wfc = jax.random.normal(ks[5], (HID, OUT), jnp.float32) * 0.1
    bfc = jax.random.normal(ks[6], (1, OUT), jnp.float32) * 0.1

    out = simple_rnn(x, wxh, bxh, whh, bhh, bh, wfc, bfc, h0)
    out = jax.block_until_ready(out)

    # pure-JAX reference for sanity
    def ref():
        h = h0
        rows = []
        for i in range(SEQ):
            h = jnp.tanh(x[i:i + 1] @ wxh + bxh + h @ whh + bhh + bh)
            rows.append(h[0])
        hs = jnp.stack(rows)
        return jax.nn.softmax(hs @ wfc + bfc, axis=1)

    r = jax.block_until_ready(ref())
    assert out.shape == (SEQ, OUT)
    assert jnp.allclose(out, r, atol=1e-5, rtol=1e-5), "mismatch vs JAX reference"
    print("KERNEL_OK")
</pallas_src>

<mosaic_0001>
module attributes {stable_mosaic.version = 11 : i64} {
  func.func @rnn_kernel(%arg0: memref<3x10xf32, #tpu.memory_space<vmem>>, %arg1: memref<10x20xf32, #tpu.memory_space<vmem>>, %arg2: memref<20x20xf32, #tpu.memory_space<vmem>>, %arg3: memref<3x20xf32, #tpu.memory_space<vmem>>, %arg4: memref<20x5xf32, #tpu.memory_space<vmem>>, %arg5: memref<1x5xf32, #tpu.memory_space<vmem>>, %arg6: memref<1x20xf32, #tpu.memory_space<vmem>>, %arg7: memref<3x5xf32, #tpu.memory_space<vmem>>) attributes {dimension_semantics = [], scalar_prefetch = 0 : i64, scratch_operands = 0 : i64, tpu.core_type = #tpu.core_type<tc>} {
    %c0 = arith.constant 0 : index
    %c0_0 = arith.constant 0 : index
    %0 = vector.load %arg2[%c0, %c0_0] : memref<20x20xf32, #tpu.memory_space<vmem>>, vector<20x20xf32>
    %c0_1 = arith.constant 0 : index
    %c0_2 = arith.constant 0 : index
    %1 = vector.load %arg3[%c0_1, %c0_2] : memref<3x20xf32, #tpu.memory_space<vmem>>, vector<3x20xf32>
    %cst = arith.constant dense<0.000000e+00> : vector<20xf32>
    %2 = vector.multi_reduction <add>, %1, %cst [0] : vector<3x20xf32> to vector<20xf32>
    %3 = vector.shape_cast %2 : vector<20xf32> to vector<1x20xf32>
    %c0_3 = arith.constant 0 : index
    %c0_4 = arith.constant 0 : index
    %4 = vector.load %arg0[%c0_3, %c0_4] : memref<3x10xf32, #tpu.memory_space<vmem>>, vector<3x10xf32>
    %c0_5 = arith.constant 0 : index
    %c0_6 = arith.constant 0 : index
    %5 = vector.load %arg1[%c0_5, %c0_6] : memref<10x20xf32, #tpu.memory_space<vmem>>, vector<10x20xf32>
    %cst_7 = arith.constant dense<0.000000e+00> : vector<3x20xf32>
    %6 = tpu.matmul %4, %5, %cst_7 {dimension_numbers = #tpu.dot_dimension_numbers<[1], [0], [0], [1], [0, 0, 1, 1], [], []>} : vector<3x10xf32>, vector<10x20xf32>, vector<3x20xf32> -> vector<3x20xf32>
    %7 = vector.broadcast %3 : vector<1x20xf32> to vector<3x20xf32>
    %8 = arith.addf %6, %7 : vector<3x20xf32>
    %c0_8 = arith.constant 0 : index
    %c0_9 = arith.constant 0 : index
    %9 = vector.load %arg6[%c0_8, %c0_9] : memref<1x20xf32, #tpu.memory_space<vmem>>, vector<1x20xf32>
    %10 = vector.extract_strided_slice %8 {offsets = [0, 0], sizes = [1, 20], strides = [1, 1]} : vector<3x20xf32> to vector<1x20xf32>
    %cst_10 = arith.constant dense<0.000000e+00> : vector<1x20xf32>
    %11 = tpu.matmul %9, %0, %cst_10 {dimension_numbers = #tpu.dot_dimension_numbers<[1], [0], [0], [1], [0, 0, 1, 1], [], []>} : vector<1x20xf32>, vector<20x20xf32>, vector<1x20xf32> -> vector<1x20xf32>
    %12 = arith.addf %10, %11 : vector<1x20xf32>
    %13 = math.tanh %12 : vector<1x20xf32>
    %14 = vector.extract_strided_slice %8 {offsets = [1, 0], sizes = [1, 20], strides = [1, 1]} : vector<3x20xf32> to vector<1x20xf32>
    %cst_11 = arith.constant dense<0.000000e+00> : vector<1x20xf32>
    %15 = tpu.matmul %13, %0, %cst_11 {dimension_numbers = #tpu.dot_dimension_numbers<[1], [0], [0], [1], [0, 0, 1, 1], [], []>} : vector<1x20xf32>, vector<20x20xf32>, vector<1x20xf32> -> vector<1x20xf32>
    %16 = arith.addf %14, %15 : vector<1x20xf32>
    %17 = math.tanh %16 : vector<1x20xf32>
    %18 = vector.extract_strided_slice %8 {offsets = [2, 0], sizes = [1, 20], strides = [1, 1]} : vector<3x20xf32> to vector<1x20xf32>
    %cst_12 = arith.constant dense<0.000000e+00> : vector<1x20xf32>
    %19 = tpu.matmul %17, %0, %cst_12 {dimension_numbers = #tpu.dot_dimension_numbers<[1], [0], [0], [1], [0, 0, 1, 1], [], []>} : vector<1x20xf32>, vector<20x20xf32>, vector<1x20xf32> -> vector<1x20xf32>
    %20 = arith.addf %18, %19 : vector<1x20xf32>
    %21 = math.tanh %20 : vector<1x20xf32>
    %22 = tpu.concatenate %13, %17, %21 in 0 : vector<1x20xf32>, vector<1x20xf32>, vector<1x20xf32> -> vector<3x20xf32>
    %c0_13 = arith.constant 0 : index
    %c0_14 = arith.constant 0 : index
    %23 = vector.load %arg4[%c0_13, %c0_14] : memref<20x5xf32, #tpu.memory_space<vmem>>, vector<20x5xf32>
    %cst_15 = arith.constant dense<0.000000e+00> : vector<3x5xf32>
    %24 = tpu.matmul %22, %23, %cst_15 {dimension_numbers = #tpu.dot_dimension_numbers<[1], [0], [0], [1], [0, 0, 1, 1], [], []>} : vector<3x20xf32>, vector<20x5xf32>, vector<3x5xf32> -> vector<3x5xf32>
    %c0_16 = arith.constant 0 : index
    %c0_17 = arith.constant 0 : index
    %25 = vector.load %arg5[%c0_16, %c0_17] : memref<1x5xf32, #tpu.memory_space<vmem>>, vector<1x5xf32>
    %26 = vector.broadcast %25 : vector<1x5xf32> to vector<3x5xf32>
    %27 = arith.addf %24, %26 : vector<3x5xf32>
    %cst_18 = arith.constant dense<0xFF800000> : vector<3xf32>
    %28 = vector.multi_reduction <maximumf>, %27, %cst_18 [1] : vector<3x5xf32> to vector<3xf32>
    %29 = vector.shape_cast %28 : vector<3xf32> to vector<3x1xf32>
    %30 = vector.broadcast %29 : vector<3x1xf32> to vector<3x5xf32>
    %31 = arith.subf %27, %30 : vector<3x5xf32>
    %32 = math.exp %31 : vector<3x5xf32>
    %cst_19 = arith.constant dense<0.000000e+00> : vector<3xf32>
    %33 = vector.multi_reduction <add>, %32, %cst_19 [1] : vector<3x5xf32> to vector<3xf32>
    %34 = vector.shape_cast %33 : vector<3xf32> to vector<3x1xf32>
    %35 = tpu.reciprocal %34 : vector<3x1xf32> -> vector<3x1xf32>
    %36 = vector.broadcast %35 : vector<3x1xf32> to vector<3x5xf32>
    %37 = arith.mulf %32, %36 : vector<3x5xf32>
    %c0_20 = arith.constant 0 : index
    %c0_21 = arith.constant 0 : index
    %38 = vector.load %arg7[%c0_20, %c0_21] : memref<3x5xf32, #tpu.memory_space<vmem>>, vector<3x5xf32>
    tpu.vector_store %arg7[%c0_20, %c0_21], %37 {strides = array<i32>} : memref<3x5xf32, #tpu.memory_space<vmem>>, vector<3x5xf32>,
    return
  }
}

</mosaic_0001>

<llo_original>
// kernel: tpu_custom_call.1
$region0: #{tpu_custom_call.1}
  #allocation0 [shape = 'u32[]', space=smem, size = 0x4, offset = 0x4, fixed_abs, tag = 'smem constant byte address 0x4 - core index']
  #allocation1 [shape = 'u32[144,128]{1,0:T(1,128)}', space=vmem, size = 0x12000, scoped, tag = 'internal scratch']
  %s0 = inlined_call_operand.vmem [shape: f32[3,10], index: 0, kind: input, shape index: {}]
  %s1 = inlined_call_operand.hbm [shape: f32[10,20], index: 1, kind: input, shape index: {}]
  %s2 = inlined_call_operand.vmem [shape: f32[20,20], index: 2, kind: input, shape index: {}]
  %s3 = inlined_call_operand.vmem [shape: f32[3,20], index: 3, kind: input, shape index: {}]
  %s4 = inlined_call_operand.vmem [shape: f32[20,5], index: 4, kind: input, shape index: {}]
  %s5 = inlined_call_operand.vmem [shape: f32[1,5], index: 5, kind: input, shape index: {}]
  %s6 = inlined_call_operand.vmem [shape: f32[1,20], index: 6, kind: input, shape index: {}]
  %s7 = inlined_call_operand.hbm [shape: f32[3,5], index: 7, kind: output, shape index: {}]
  %s8 = sld [smem:[#allocation0]]
  $region42: #{tpu_custom_call.1} parent=0
    _
  %s10 = ssub.s32 1, %s8
  %s11 = scalar_select 0, %s10, %s8
  $region1: #{tpu_custom_call.1} parent=0
    #allocation2 [shape = 'u8[8192]{0}', space=vmem, size = 0x2000, scoped, tag = 'input window, operand 1, single buffered']
    #allocation3 [shape = 's32[1]{0}', space=sflag, size = 0x4, scoped, tag = 'scoped memory for tpu_custom_call.1']
    #allocation4 [shape = 's32[1]{0}', space=sflag, size = 0x4, scoped, tag = 'scoped memory for tpu_custom_call.1']
    #allocation5 [shape = 'u8[2048]{0}', space=vmem, size = 0x800, scoped, tag = 'output window, operand 0, single buffered']
    %12 = vsyncpa [#allocation3], 0
    %13 = vsyncpa [#allocation4], 0
    // Predicated region
    $region2: #{tpu_custom_call.1} parent=1 // pred_check
      _
    $region3: #{tpu_custom_call.1} parent=1 // pred_check_branch
      %15 = sbr.rel (0) target = $region5
    $region4: #{tpu_custom_call.1} parent=1 // pred_region
      _
    $region5: #{tpu_custom_call.1} parent=1 // pred_fallthru
      _
    // Predicated region
    $region6: #{tpu_custom_call.1} parent=1 // pred_check
      _
    $region7: #{tpu_custom_call.1} parent=1 // pred_check_branch
      %17 = sbr.rel (0) target = $region9
    $region8: #{tpu_custom_call.1} parent=1 // pred_region
      %s19 = ssub.s32 256, 256
      %20 = vsyncadd [#allocation3], %s19
      %s21 = sshll.u32 [#allocation2], 4
      %s22 = int_to_ptr.vmem [resolvable:$true] %s21
      %27 = dma.hbm_to_vmem [thread:$0]  %s1, 256, %s22, [#allocation3], 128, 128, 8
    $region9: #{tpu_custom_call.1} parent=1 // pred_fallthru
      _
    // Predicated region
    $region10: #{tpu_custom_call.1} parent=1 // pred_check
      _
    $region11: #{tpu_custom_call.1} parent=1 // pred_check_branch
      %29 = sbr.rel (0) target = $region13
    $region12: #{tpu_custom_call.1} parent=1 // pred_region
      _
    $region13: #{tpu_custom_call.1} parent=1 // pred_fallthru
      _
    // Predicated region
    $region14: #{tpu_custom_call.1} parent=1 // pred_check
      _
    $region15: #{tpu_custom_call.1} parent=1 // pred_check_branch
      %31 = sbr.rel (0) target = $region17
    $region16: #{tpu_custom_call.1} parent=1 // pred_region
      _
    $region17: #{tpu_custom_call.1} parent=1 // pred_fallthru
      _
    // Predicated region
    $region18: #{tpu_custom_call.1} parent=1 // pred_check
      _
    $region19: #{tpu_custom_call.1} parent=1 // pred_check_branch
      %33 = sbr.rel (0) target = $region21
    $region20: #{tpu_custom_call.1} parent=1 // pred_region
      _
    $region21: #{tpu_custom_call.1} parent=1 // pred_fallthru
      _
    // Predicated region
    $region22: #{tpu_custom_call.1} parent=1 // pred_check
      _
    $region23: #{tpu_custom_call.1} parent=1 // pred_check_branch
      %35 = sbr.rel (0) target = $region25
    $region24: #{tpu_custom_call.1} parent=1 // pred_region
      _
    $region25: #{tpu_custom_call.1} parent=1 // pred_fallthru
      _
    // Predicated region
    $region26: #{tpu_custom_call.1} parent=1 // pred_check
      _
    $region27: #{tpu_custom_call.1} parent=1 // pred_check_branch
      %37 = sbr.rel (0) target = $region29
    $region28: #{tpu_custom_call.1} parent=1 // pred_region
      _
    $region29: #{tpu_custom_call.1} parent=1 // pred_fallthru
      _
    // Predicated region
    $region30: #{tpu_custom_call.1} parent=1 // pred_check
      _
    $region31: #{tpu_custom_call.1} parent=1 // pred_check_branch
      %39 = sbr.rel (0) target = $region33
    $region32: #{tpu_custom_call.1} parent=1 // pred_region
      %40 = dma.done [#allocation3], 256
    $region33: #{tpu_custom_call.1} parent=1 // pred_fallthru
      _
    %v41 = vld [vmem:[%s2] sm:$0xff]
    %v42 = vld [vmem:[%s2 + $0x8] sm:$0xff]
    %v43 = vld [vmem:[%s2 + $0x10] sm:$0xf]
    %v44 = vld [vmem:[%s3] sm:$0x7]
    %vm45 = vcmask 157696
    %v46 = vsel %vm45, %v44, 0.0
    %v47 = vrot.slane %v46, 4
    %v48 = vadd.f32 %v46, %v47
    %v49 = vrot.slane %v48, 2
    %v50 = vadd.f32 %v48, %v49
    %v51 = vrot.slane %v50, 1
    %v52 = vadd.f32 %v50, %v51
    %v53 = vld [vmem:[%s0] sm:$0x7]
    %v54 = vld [vmem:[#allocation2] sm:$0xff]
    %v55 = vld [vmem:[#allocation2 + $0x8] sm:$0x3]
    %vm56 = vcmask 80896
    %v58 = vsel %vm56, %v53, 0
    %vm60 = vcmask 1041408
    %v62 = vsel %vm60, %v55, 0
    %64 = vmatprep.subr.mxu0 0.0
    %65 = vmatpush1.msra.mxu0 0.0
    %66 = vmatprep.subr.mxu0 0.0
    %67 = vmatpush1.msra.mxu0 0.0
    %68 = vmatprep.subr.mxu0 0.0
    %69 = vmatpush1.msra.mxu0 0.0
    %70 = vmatprep.subr.mxu0 0.0
    %71 = vmatpush1.msra.mxu0 0.0
    %72 = vmatprep.subr.mxu0 0.0
    %73 = vmatpush1.msra.mxu0 0.0
    %74 = vmatprep.subr.mxu0 0.0
    %75 = vmatpush1.msra.mxu0 0.0
    %76 = vmatprep.subr.mxu0 0.0
    %77 = vmatpush1.msra.mxu0 0.0
    %78 = vmatprep.subr.mxu0 0.0
    %79 = vmatpush1.msra.mxu0 0.0
    %80 = vmatprep.subr.mxu0 0.0
    %81 = vmatpush1.msra.mxu0 0.0
    %82 = vmatprep.subr.mxu0 0.0
    %83 = vmatpush1.msra.mxu0 0.0
    %84 = vmatprep.subr.mxu0 0.0
    %85 = vmatpush1.msra.mxu0 0.0
    %86 = vmatprep.subr.mxu0 0.0
    %87 = vmatpush1.msra.mxu0 0.0
    %88 = vmatprep.subr.mxu0 0.0
    %89 = vmatpush1.msra.mxu0 0.0
    %90 = vmatprep.subr.mxu0 0.0
    %91 = vmatpush1.msra.mxu0 0.0
    %92 = vmatprep.subr.mxu0 0.0
    %93 = vmatpush1.msra.mxu0 %v62
    %94 = vmatprep.subr.mxu0 0.0
    %95 = vmatpush1.msra.mxu0 %v54
    %96 = vmatprep.subr.mxu0 0.0
    %97 = vmatpush2.msra.mxu0 0.0
    %98 = vmatprep.subr.mxu0 0.0
    %99 = vmatpush2.msra.mxu0 0.0
    %100 = vmatprep.subr.mxu0 0.0
    %101 = vmatpush2.msra.mxu0 0.0
    %102 = vmatprep.subr.mxu0 0.0
    %103 = vmatpush2.msra.mxu0 0.0
    %104 = vmatprep.subr.mxu0 0.0
    %105 = vmatpush2.msra.mxu0 0.0
    %106 = vmatprep.subr.mxu0 0.0
    %107 = vmatpush2.msra.mxu0 0.0
    %108 = vmatprep.subr.mxu0 0.0
    %109 = vmatpush2.msra.mxu0 0.0
    %110 = vmatprep.subr.mxu0 0.0
    %111 = vmatpush2.msra.mxu0 0.0
    %112 = vmatprep.subr.mxu0 0.0
    %113 = vmatpush2.msra.mxu0 0.0
    %114 = vmatprep.subr.mxu0 0.0
    %115 = vmatpush2.msra.mxu0 0.0
    %116 = vmatprep.subr.mxu0 0.0
    %117 = vmatpush2.msra.mxu0 0.0
    %118 = vmatprep.subr.mxu0 0.0
    %119 = vmatpush2.msra.mxu0 0.0
    %120 = vmatprep.subr.mxu0 0.0
    %121 = vmatpush2.msra.mxu0 0.0
    %122 = vmatprep.subr.mxu0 0.0
    %123 = vmatpush2.msra.mxu0 0.0
    %124 = vmatprep.subr.mxu0 0.0
    %125 = vmatpush2.msra.mxu0 0.0
    %126 = vmatprep.subr.mxu0 0.0
    %127 = vmatpush2.msra.mxu0 0.0
    %128 = vmatprep.mubr.f32.mxu0 0.0
    %129 = vmatmul.mubr.f32.gmra.mxu0 %v58
    %v130 = vpop.f32.mrf.mxu0
    %v131 = vadd.f32 %v52, %v130
    %v132 = vpop.f32.mrf.mxu0
    %133 = vdwg.mxu0
    %v134 = vld [vmem:[%s6] sm:$0x1]
    %vm135 = vcmask 162816
    %v137 = vsel %vm135, %v134, 0
    %vm139 = vcmask 1043456
    %v141 = vsel %vm139, %v43, 0
    %143 = vmatprep.subr.mxu0 0.0
    %144 = vmatpush1.msra.mxu0 0.0
    %145 = vmatprep.subr.mxu0 0.0
    %146 = vmatpush1.msra.mxu0 0.0
    %147 = vmatprep.subr.mxu0 0.0
    %148 = vmatpush1.msra.mxu0 0.0
    %149 = vmatprep.subr.mxu0 0.0
    %150 = vmatpush1.msra.mxu0 0.0
    %151 = vmatprep.subr.mxu0 0.0
    %152 = vmatpush1.msra.mxu0 0.0
    %153 = vmatprep.subr.mxu0 0.0
    %154 = vmatpush1.msra.mxu0 0.0
    %155 = vmatprep.subr.mxu0 0.0
    %156 = vmatpush1.msra.mxu0 0.0
    %157 = vmatprep.subr.mxu0 0.0
    %158 = vmatpush1.msra.mxu0 0.0
    %159 = vmatprep.subr.mxu0 0.0
    %160 = vmatpush1.msra.mxu0 0.0
    %161 = vmatprep.subr.mxu0 0.0
    %162 = vmatpush1.msra.mxu0 0.0
    %163 = vmatprep.subr.mxu0 0.0
    %164 = vmatpush1.msra.mxu0 0.0
    %165 = vmatprep.subr.mxu0 0.0
    %166 = vmatpush1.msra.mxu0 0.0
    %167 = vmatprep.subr.mxu0 0.0
    %168 = vmatpush1.msra.mxu0 0.0
    %169 = vmatprep.subr.mxu0 0.0
    %170 = vmatpush1.msra.mxu0 %v141
    %171 = vmatprep.subr.mxu0 0.0
    %172 = vmatpush1.msra.mxu0 %v42
    %173 = vmatprep.subr.mxu0 0.0
    %174 = vmatpush1.msra.mxu0 %v41
    %175 = vmatprep.subr.mxu0 0.0
    %176 = vmatpush2.msra.mxu0 0.0
    %177 = vmatprep.subr.mxu0 0.0
    %178 = vmatpush2.msra.mxu0 0.0
    %179 = vmatprep.subr.mxu0 0.0
    %180 = vmatpush2.msra.mxu0 0.0
    %181 = vmatprep.subr.mxu0 0.0
    %182 = vmatpush2.msra.mxu0 0.0
    %183 = vmatprep.subr.mxu0 0.0
    %184 = vmatpush2.msra.mxu0 0.0
    %185 = vmatprep.subr.mxu0 0.0
    %186 = vmatpush2.msra.mxu0 0.0
    %187 = vmatprep.subr.mxu0 0.0
    %188 = vmatpush2.msra.mxu0 0.0
    %189 = vmatprep.subr.mxu0 0.0
    %190 = vmatpush2.msra.mxu0 0.0
    %191 = vmatprep.subr.mxu0 0.0
    %192 = vmatpush2.msra.mxu0 0.0
    %193 = vmatprep.subr.mxu0 0.0
    %194 = vmatpush2.msra.mxu0 0.0
    %195 = vmatprep.subr.mxu0 0.0
    %196 = vmatpush2.msra.mxu0 0.0
    %197 = vmatprep.subr.mxu0 0.0
    %198 = vmatpush2.msra.mxu0 0.0
    %199 = vmatprep.subr.mxu0 0.0
    %200 = vmatpush2.msra.mxu0 0.0
    %201 = vmatprep.subr.mxu0 0.0
    %202 = vmatpush2.msra.mxu0 0.0
    %203 = vmatprep.subr.mxu0 0.0
    %204 = vmatpush2.msra.mxu0 0.0
    %205 = vmatprep.subr.mxu0 0.0
    %206 = vmatpush2.msra.mxu0 0.0
    %207 = vmatprep.mubr.f32.mxu0 0.0
    %208 = vmatmul.mubr.f32.gmra.mxu0 %v137
    %v209 = vpop.f32.mrf.mxu0
    %v210 = vadd.f32 0.0, %v209
    %v211 = vpop.f32.mrf.mxu0
    %212 = vdwg.mxu0
    %v213 = vadd.f32 %v131, %v210
    %v214 = vtanh.pop %v213
    %v216 = vsel %vm135, %v214, 0
    %218 = vmatprep.subr.mxu0 0.0
    %219 = vmatpush1.msra.mxu0 0.0
    %220 = vmatprep.subr.mxu0 0.0
    %221 = vmatpush1.msra.mxu0 0.0
    %222 = vmatprep.subr.mxu0 0.0
    %223 = vmatpush1.msra.mxu0 0.0
    %224 = vmatprep.subr.mxu0 0.0
    %225 = vmatpush1.msra.mxu0 0.0
    %226 = vmatprep.subr.mxu0 0.0
    %227 = vmatpush1.msra.mxu0 0.0
    %228 = vmatprep.subr.mxu0 0.0
    %229 = vmatpush1.msra.mxu0 0.0
    %230 = vmatprep.subr.mxu0 0.0
    %231 = vmatpush1.msra.mxu0 0.0
    %232 = vmatprep.subr.mxu0 0.0
    %233 = vmatpush1.msra.mxu0 0.0
    %234 = vmatprep.subr.mxu0 0.0
    %235 = vmatpush1.msra.mxu0 0.0
    %236 = vmatprep.subr.mxu0 0.0
    %237 = vmatpush1.msra.mxu0 0.0
    %238 = vmatprep.subr.mxu0 0.0
    %239 = vmatpush1.msra.mxu0 0.0
    %240 = vmatprep.subr.mxu0 0.0
    %241 = vmatpush1.msra.mxu0 0.0
    %242 = vmatprep.subr.mxu0 0.0
    %243 = vmatpush1.msra.mxu0 0.0
    %244 = vmatprep.subr.mxu0 0.0
    %245 = vmatpush1.msra.mxu0 %v141
    %246 = vmatprep.subr.mxu0 0.0
    %247 = vmatpush1.msra.mxu0 %v42
    %248 = vmatprep.subr.mxu0 0.0
    %249 = vmatpush1.msra.mxu0 %v41
    %250 = vmatprep.subr.mxu0 0.0
    %251 = vmatpush2.msra.mxu0 0.0
    %252 = vmatprep.subr.mxu0 0.0
    %253 = vmatpush2.msra.mxu0 0.0
    %254 = vmatprep.subr.mxu0 0.0
    %255 = vmatpush2.msra.mxu0 0.0
    %256 = vmatprep.subr.mxu0 0.0
    %257 = vmatpush2.msra.mxu0 0.0
    %258 = vmatprep.subr.mxu0 0.0
    %259 = vmatpush2.msra.mxu0 0.0
    %260 = vmatprep.subr.mxu0 0.0
    %261 = vmatpush2.msra.mxu0 0.0
    %262 = vmatprep.subr.mxu0 0.0
    %263 = vmatpush2.msra.mxu0 0.0
    %264 = vmatprep.subr.mxu0 0.0
    %265 = vmatpush2.msra.mxu0 0.0
    %266 = vmatprep.subr.mxu0 0.0
    %267 = vmatpush2.msra.mxu0 0.0
    %268 = vmatprep.subr.mxu0 0.0
    %269 = vmatpush2.msra.mxu0 0.0
    %270 = vmatprep.subr.mxu0 0.0
    %271 = vmatpush2.msra.mxu0 0.0
    %272 = vmatprep.subr.mxu0 0.0
    %273 = vmatpush2.msra.mxu0 0.0
    %274 = vmatprep.subr.mxu0 0.0
    %275 = vmatpush2.msra.mxu0 0.0
    %276 = vmatprep.subr.mxu0 0.0
    %277 = vmatpush2.msra.mxu0 0.0
    %278 = vmatprep.subr.mxu0 0.0
    %279 = vmatpush2.msra.mxu0 0.0
    %280 = vmatprep.subr.mxu0 0.0
    %281 = vmatpush2.msra.mxu0 0.0
    %282 = vmatprep.mubr.f32.mxu0 0.0
    %283 = vmatmul.mubr.f32.gmra.mxu0 %v216
    %v284 = vpop.f32.mrf.mxu0
    %v285 = vadd.f32 0.0, %v284
    %v286 = vpop.f32.mrf.mxu0
    %287 = vdwg.mxu0
    %v289 = vrot.slane %v285, 7
    %v291 = vadd.f32 %v131, %v289
    %v292 = vtanh.pop %v291
    %v294 = vrot.slane %v292, 1
    %v295 = vsel %vm135, %v294, 0
    %297 = vmatprep.subr.mxu0 0.0
    %298 = vmatpush1.msra.mxu0 0.0
    %299 = vmatprep.subr.mxu0 0.0
    %300 = vmatpush1.msra.mxu0 0.0
    %301 = vmatprep.subr.mxu0 0.0
    %302 = vmatpush1.msra.mxu0 0.0
    %303 = vmatprep.subr.mxu0 0.0
    %304 = vmatpush1.msra.mxu0 0.0
    %305 = vmatprep.subr.mxu0 0.0
    %306 = vmatpush1.msra.mxu0 0.0
    %307 = vmatprep.subr.mxu0 0.0
    %308 = vmatpush1.msra.mxu0 0.0
    %309 = vmatprep.subr.mxu0 0.0
    %310 = vmatpush1.msra.mxu0 0.0
    %311 = vmatprep.subr.mxu0 0.0
    %312 = vmatpush1.msra.mxu0 0.0
    %313 = vmatprep.subr.mxu0 0.0
    %314 = vmatpush1.msra.mxu0 0.0
    %315 = vmatprep.subr.mxu0 0.0
    %316 = vmatpush1.msra.mxu0 0.0
    %317 = vmatprep.subr.mxu0 0.0
    %318 = vmatpush1.msra.mxu0 0.0
    %319 = vmatprep.subr.mxu0 0.0
    %320 = vmatpush1.msra.mxu0 0.0
    %321 = vmatprep.subr.mxu0 0.0
    %322 = vmatpush1.msra.mxu0 0.0
    %323 = vmatprep.subr.mxu0 0.0
    %324 = vmatpush1.msra.mxu0 %v141
    %325 = vmatprep.subr.mxu0 0.0
    %326 = vmatpush1.msra.mxu0 %v42
    %327 = vmatprep.subr.mxu0 0.0
    %328 = vmatpush1.msra.mxu0 %v41
    %329 = vmatprep.subr.mxu0 0.0
    %330 = vmatpush2.msra.mxu0 0.0
    %331 = vmatprep.subr.mxu0 0.0
    %332 = vmatpush2.msra.mxu0 0.0
    %333 = vmatprep.subr.mxu0 0.0
    %334 = vmatpush2.msra.mxu0 0.0
    %335 = vmatprep.subr.mxu0 0.0
    %336 = vmatpush2.msra.mxu0 0.0
    %337 = vmatprep.subr.mxu0 0.0
    %338 = vmatpush2.msra.mxu0 0.0
    %339 = vmatprep.subr.mxu0 0.0
    %340 = vmatpush2.msra.mxu0 0.0
    %341 = vmatprep.subr.mxu0 0.0
    %342 = vmatpush2.msra.mxu0 0.0
    %343 = vmatprep.subr.mxu0 0.0
    %344 = vmatpush2.msra.mxu0 0.0
    %345 = vmatprep.subr.mxu0 0.0
    %346 = vmatpush2.msra.mxu0 0.0
    %347 = vmatprep.subr.mxu0 0.0
    %348 = vmatpush2.msra.mxu0 0.0
    %349 = vmatprep.subr.mxu0 0.0
    %350 = vmatpush2.msra.mxu0 0.0
    %351 = vmatprep.subr.mxu0 0.0
    %352 = vmatpush2.msra.mxu0 0.0
    %353 = vmatprep.subr.mxu0 0.0
    %354 = vmatpush2.msra.mxu0 0.0
    %355 = vmatprep.subr.mxu0 0.0
    %356 = vmatpush2.msra.mxu0 0.0
    %357 = vmatprep.subr.mxu0 0.0
    %358 = vmatpush2.msra.mxu0 0.0
    %359 = vmatprep.subr.mxu0 0.0
    %360 = vmatpush2.msra.mxu0 0.0
    %361 = vmatprep.mubr.f32.mxu0 0.0
    %362 = vmatmul.mubr.f32.gmra.mxu0 %v295
    %v363 = vpop.f32.mrf.mxu0
    %v364 = vadd.f32 0.0, %v363
    %v365 = vpop.f32.mrf.mxu0
    %366 = vdwg.mxu0
    %v368 = vrot.slane %v364, 6
    %v370 = vadd.f32 %v131, %v368
    %v371 = vtanh.pop %v370
    %vm372 = vcmask 1040384
    %v373 = vsel %vm372, %v214, %v292
    %v374 = vsel %vm60, %v373, %v371
    %v375 = vld [vmem:[%s4] sm:$0xff]
    %v376 = vld [vmem:[%s4 + $0x8] sm:$0xff]
    %v377 = vld [vmem:[%s4 + $0x10] sm:$0xf]
    %v378 = vld [vmem:[%s5] sm:$0x1]
    %v380 = vlaneseq
    %v381 = vshrl.u32 %v380, 7
    %v382 = vsub.s32 0, %v381
    %v383 = vrot.slane %v378, %v382
    %v386 = vsel %vm135, %v374, 0
    %v389 = vsel %vm139, %v377, 0
    %391 = vmatprep.subr.mxu0 0.0
    %392 = vmatpush1.msra.mxu0 0.0
    %393 = vmatprep.subr.mxu0 0.0
    %394 = vmatpush1.msra.mxu0 0.0
    %395 = vmatprep.subr.mxu0 0.0
    %396 = vmatpush1.msra.mxu0 0.0
    %397 = vmatprep.subr.mxu0 0.0
    %398 = vmatpush1.msra.mxu0 0.0
    %399 = vmatprep.subr.mxu0 0.0
    %400 = vmatpush1.msra.mxu0 0.0
    %401 = vmatprep.subr.mxu0 0.0
    %402 = vmatpush1.msra.mxu0 0.0
    %403 = vmatprep.subr.mxu0 0.0
    %404 = vmatpush1.msra.mxu0 0.0
    %405 = vmatprep.subr.mxu0 0.0
    %406 = vmatpush1.msra.mxu0 0.0
    %407 = vmatprep.subr.mxu0 0.0
    %408 = vmatpush1.msra.mxu0 0.0
    %409 = vmatprep.subr.mxu0 0.0
    %410 = vmatpush1.msra.mxu0 0.0
    %411 = vmatprep.subr.mxu0 0.0
    %412 = vmatpush1.msra.mxu0 0.0
    %413 = vmatprep.subr.mxu0 0.0
    %414 = vmatpush1.msra.mxu0 0.0
    %415 = vmatprep.subr.mxu0 0.0
    %416 = vmatpush1.msra.mxu0 0.0
    %417 = vmatprep.subr.mxu0 0.0
    %418 = vmatpush1.msra.mxu0 %v389
    %419 = vmatprep.subr.mxu0 0.0
    %420 = vmatpush1.msra.mxu0 %v376
    %421 = vmatprep.subr.mxu0 0.0
    %422 = vmatpush1.msra.mxu0 %v375
    %423 = vmatprep.subr.mxu0 0.0
    %424 = vmatpush2.msra.mxu0 0.0
    %425 = vmatprep.subr.mxu0 0.0
    %426 = vmatpush2.msra.mxu0 0.0
    %427 = vmatprep.subr.mxu0 0.0
    %428 = vmatpush2.msra.mxu0 0.0
    %429 = vmatprep.subr.mxu0 0.0
    %430 = vmatpush2.msra.mxu0 0.0
    %431 = vmatprep.subr.mxu0 0.0
    %432 = vmatpush2.msra.mxu0 0.0
    %433 = vmatprep.subr.mxu0 0.0
    %434 = vmatpush2.msra.mxu0 0.0
    %435 = vmatprep.subr.mxu0 0.0
    %436 = vmatpush2.msra.mxu0 0.0
    %437 = vmatprep.subr.mxu0 0.0
    %438 = vmatpush2.msra.mxu0 0.0
    %439 = vmatprep.subr.mxu0 0.0
    %440 = vmatpush2.msra.mxu0 0.0
    %441 = vmatprep.subr.mxu0 0.0
    %442 = vmatpush2.msra.mxu0 0.0
    %443 = vmatprep.subr.mxu0 0.0
    %444 = vmatpush2.msra.mxu0 0.0
    %445 = vmatprep.subr.mxu0 0.0
    %446 = vmatpush2.msra.mxu0 0.0
    %447 = vmatprep.subr.mxu0 0.0
    %448 = vmatpush2.msra.mxu0 0.0
    %449 = vmatprep.subr.mxu0 0.0
    %450 = vmatpush2.msra.mxu0 0.0
    %451 = vmatprep.subr.mxu0 0.0
    %452 = vmatpush2.msra.mxu0 0.0
    %453 = vmatprep.subr.mxu0 0.0
    %454 = vmatpush2.msra.mxu0 0.0
    %455 = vmatprep.mubr.f32.mxu0 0.0
    %456 = vmatmul.mubr.f32.gmra.mxu0 %v386
    %v457 = vpop.f32.mrf.mxu0
    %v458 = vadd.f32 %v383, %v457
    %v459 = vpop.f32.mrf.mxu0
    %460 = vdwg.mxu0
    %vm461 = vcmask 34816
    %v462 = vsel %vm461, %v458, -inf
    %463 = vmax.xlane.f32.xlu0 %v462
    %v464 = vpop.xlane.xlu0 %463
    %v465 = vsub.f32 %v458, %v464
    %v466 = vmul.f32 %v465, 1.442695
    %v467 = vpow.pop %v466
    %v468 = vsel %vm461, %v467, 0.0
    %469 = vadd.xlane.f32.xlu0 %v468
    %v470 = vpop.xlane.xlu0 %469
    %v471 = vrcp.pop %v470
    %v472 = vmul.f32 %v467, %v471
    %473 = vst.msk [vmem:[#allocation5] sm:$0x7] %vm461, %v472
    // Predicated region
    $region34: #{tpu_custom_call.1} parent=1 // pred_check
      _
    $region35: #{tpu_custom_call.1} parent=1 // pred_check_branch
      %475 = sbr.rel (0) target = $region37
    $region36: #{tpu_custom_call.1} parent=1 // pred_region
      %s477 = ssub.s32 64, 64
      %478 = vsyncadd [#allocation4], %s477
      %s480 = sshll.u32 [#allocation5], 4
      %s481 = int_to_ptr.vmem [resolvable:$true] %s480
      %483 = dma.vmem_to_hbm [thread:$0]  %s481, 64, %s7, [#allocation4]
    $region37: #{tpu_custom_call.1} parent=1 // pred_fallthru
      _
    // Predicated region
    $region38: #{tpu_custom_call.1} parent=1 // pred_check
      _
    $region39: #{tpu_custom_call.1} parent=1 // pred_check_branch
      %485 = sbr.rel (0) target = $region41
    $region40: #{tpu_custom_call.1} parent=1 // pred_region
      %486 = dma.done [#allocation4], 64
    $region41: #{tpu_custom_call.1} parent=1 // pred_fallthru
      _
    %487 = vsyncpa [#allocation3], 1
    %488 = vsyncpa [#allocation4], 1

</llo_original>
